<compile_context>
chip_gen: v7x
topology: tpu7x:2x2x1
jax: 0.10.0
libtpu: 0.0.40
codegen_flags: <defaults>
</compile_context>

<pallas_src>
import functools

import jax
import jax.numpy as jnp
from jax.experimental import pallas as pl
from jax.experimental.pallas import tpu as pltpu

HIDDEN = 128


def _round_up(n, m):
    return ((n + m - 1) // m) * m


def _default_act_dtype():
    """bf16 elementwise only where the VPU is bf16-native (v6e / v7x)."""
    try:
        kind = jax.devices()[0].device_kind.lower()
    except Exception:
        return jnp.float32
    if "v6" in kind or "v7" in kind:
        return jnp.bfloat16
    return jnp.float32


def ppo_critic_kernel(
    x_ref,
    w1_ref, b1_ref,
    w2_ref, b2_ref,
    w3_ref, b3_ref,
    w4_ref, b4_ref,
    o_ref,
    *,
    act_dtype,
):
    """One batch tile of the fused 4-layer MLP.

    x / w1..w3 are bf16, every dot accumulates in f32 on the MXU, bias-add and
    ReLU run in `act_dtype` (bf16 on v6e/v7x, f32 on older chips).  fc4 is a
    VPU multiply + lane reduction -> narrow (tm, 1) f32 output.
    """
    h = x_ref[...]                                              # (tm, f_pad) bf16

    h = jnp.dot(h, w1_ref[...], preferred_element_type=jnp.float32)
    h = jnp.maximum(h.astype(act_dtype) + b1_ref[...], 0.0)

    h = jnp.dot(h.astype(jnp.bfloat16), w2_ref[...],
                preferred_element_type=jnp.float32)
    h = jnp.maximum(h.astype(act_dtype) + b2_ref[...], 0.0)

    h = jnp.dot(h.astype(jnp.bfloat16), w3_ref[...],
                preferred_element_type=jnp.float32)
    h = jnp.maximum(h.astype(act_dtype) + b3_ref[...], 0.0)

    # fc4: 128 -> 1.  An MXU pass here would waste 127/128 of the array and
    # force a 128-wide output store; do it on the VPU/XLU instead.
    v = jnp.sum(h.astype(jnp.float32) * w4_ref[...], axis=-1, keepdims=True)
    o_ref[...] = (v + b4_ref[...]).astype(o_ref.dtype)


def init_params(key, num_features):
    """torch.nn.Linear-style init (U[-1/sqrt(fan_in), 1/sqrt(fan_in)]).

    Weights stored as (in_features, out_features); biases as (1, out_features).
    """
    dims = [(num_features, HIDDEN), (HIDDEN, HIDDEN), (HIDDEN, HIDDEN), (HIDDEN, 1)]
    params = {}
    for i, (fan_in, fan_out) in enumerate(dims, start=1):
        key, kw, kb = jax.random.split(key, 3)
        bound = 1.0 / jnp.sqrt(jnp.float32(fan_in))
        params[f"w{i}"] = jax.random.uniform(
            kw, (fan_in, fan_out), jnp.float32, minval=-bound, maxval=bound)
        params[f"b{i}"] = jax.random.uniform(
            kb, (1, fan_out), jnp.float32, minval=-bound, maxval=bound)
    return params


def prepare_params(params, *, act_dtype=None):
    """One-time packing of the f32 (in, out) params into kernel layout:

      * w1..w3 -> bfloat16; w1 rows zero-padded to a multiple of 8 (ragged K fix)
      * b1..b3 -> act_dtype (bf16 on v6e/v7x, f32 elsewhere)
      * fc4 -> (1, 128) f32 weight row + (1, 1) f32 bias (narrow output path)
    """
    if act_dtype is None:
        act_dtype = _default_act_dtype()

    f_in = params["w1"].shape[0]
    f_pad = _round_up(f_in, 8)

    w1 = jnp.zeros((f_pad, HIDDEN), jnp.bfloat16)
    w1 = w1.at[:f_in, :].set(params["w1"].astype(jnp.bfloat16))

    return {
        "w1": w1,
        "b1": params["b1"].astype(act_dtype),
        "w2": params["w2"].astype(jnp.bfloat16),
        "b2": params["b2"].astype(act_dtype),
        "w3": params["w3"].astype(jnp.bfloat16),
        "b3": params["b3"].astype(act_dtype),
        "w4": params["w4"].astype(jnp.float32).reshape(1, HIDDEN),  # (128,1) -> (1,128)
        "b4": params["b4"].astype(jnp.float32),                      # (1, 1)
    }


def ppo_critic_forward(x, kparams, *, block_m=1024):
    """x: (B, num_features) f32; kparams: output of prepare_params.
    Returns (B, 1) f32 value estimates."""
    B, F = x.shape
    f_pad = kparams["w1"].shape[0]
    act_dtype = kparams["b1"].dtype

    # Pad batch only to a multiple of 8, then pick the minimal number of tiles
    # with rows-per-tile capped at block_m (avoids up-to-2x wasted rows when B
    # is just above a multiple of block_m).
    b8 = _round_up(max(B, 1), 8)
    n_tiles = pl.cdiv(b8, block_m)
    # v7x: the "parallel" batch axis only shards across the 2 TensorCores when
    # the grid has >= 2 steps; split moderately large batches even if one tile
    # would fit.  Costs one extra ~0.35us grid step on 1-TC chips.
    if n_tiles == 1 and b8 >= 512:
        n_tiles = 2
    tm = _round_up(pl.cdiv(b8, n_tiles), 8)
    b_pad = n_tiles * tm

    # Pad batch rows / feature columns; the bf16 cast is fused into this copy.
    # (zero feature cols x zero w1 rows -> no effect on the result)
    x_p = jnp.zeros((b_pad, f_pad), jnp.bfloat16).at[:B, :F].set(
        x.astype(jnp.bfloat16))

    kernel = functools.partial(ppo_critic_kernel, act_dtype=act_dtype)

    const = lambda i: (0, 0)  # weights/biases: same block every step -> VMEM-resident
    in_specs = [
        pl.BlockSpec((tm, f_pad), lambda i: (i, 0)),        # x tile
        pl.BlockSpec((f_pad, HIDDEN), const),               # w1
        pl.BlockSpec((1, HIDDEN), const),                   # b1
        pl.BlockSpec((HIDDEN, HIDDEN), const),              # w2
        pl.BlockSpec((1, HIDDEN), const),                   # b2
        pl.BlockSpec((HIDDEN, HIDDEN), const),              # w3
        pl.BlockSpec((1, HIDDEN), const),                   # b3
        pl.BlockSpec((1, HIDDEN), const),                   # w4 row (f32)
        pl.BlockSpec((1, 1), const),                        # b4 (f32)
    ]
    out_specs = pl.BlockSpec((tm, 1), lambda i: (i, 0))      # narrow (tm, 1) output

    act_bytes = jnp.dtype(act_dtype).itemsize
    flops = 2 * b_pad * (f_pad * HIDDEN + 2 * HIDDEN * HIDDEN + HIDDEN)
    weight_bytes = ((f_pad + 2 * HIDDEN) * HIDDEN * 2        # bf16 w1..w3
                    + 3 * HIDDEN * act_bytes                 # b1..b3
                    + (HIDDEN + 1) * 4)                      # w4 row + b4
    bytes_accessed = weight_bytes + b_pad * f_pad * 2 + b_pad * 4

    out_p = pl.pallas_call(
        kernel,
        out_shape=jax.ShapeDtypeStruct((b_pad, 1), jnp.float32),
        grid=(n_tiles,),
        in_specs=in_specs,
        out_specs=out_specs,
        compiler_params=pltpu.CompilerParams(
            dimension_semantics=("parallel",)),
        cost_estimate=pl.CostEstimate(
            flops=flops, transcendentals=0, bytes_accessed=bytes_accessed),
    )(
        x_p,
        kparams["w1"], kparams["b1"],
        kparams["w2"], kparams["b2"],
        kparams["w3"], kparams["b3"],
        kparams["w4"], kparams["b4"],
    )

    return out_p[:B]


def reference_forward(x, params, act_dtype=jnp.float32):
    """Pure-JAX reference mirroring the kernel's numerics:
    bf16 weights / bf16 x, f32 MXU accumulation, act_dtype bias+ReLU, and a
    multiply-reduce final layer.  (Differs from the f32 PyTorch module at the
    ~1e-3 level due to bf16 casts; acceptable for PPO value estimates.)"""
    h = x.astype(jnp.bfloat16)
    for i in (1, 2, 3):
        acc = jnp.dot(h.astype(jnp.bfloat16),
                      params[f"w{i}"].astype(jnp.bfloat16),
                      preferred_element_type=jnp.float32)
        h = jnp.maximum(acc.astype(act_dtype) + params[f"b{i}"].astype(act_dtype),
                        0.0)
    w4_row = params["w4"].astype(jnp.float32).reshape(1, HIDDEN)
    v = jnp.sum(h.astype(jnp.float32) * w4_row, axis=-1, keepdims=True)
    return v + params["b4"]


if __name__ == "__main__":
    key = jax.random.PRNGKey(0)
    num_features = 3   # pendulum observation: [cos(theta), sin(theta), theta_dot]
    batch = 8

    key, kx, kp = jax.random.split(key, 3)
    x = jax.random.normal(kx, (batch, num_features), jnp.float32)
    params = init_params(kp, num_features)

    act_dtype = _default_act_dtype()
    kparams = prepare_params(params, act_dtype=act_dtype)

    out = ppo_critic_forward(x, kparams)
    out = jax.block_until_ready(out)

    ref = reference_forward(x, params, act_dtype=act_dtype)
    assert out.shape == (batch, 1)
    assert jnp.allclose(out, ref, atol=2e-3, rtol=2e-3), (
        f"Pallas output mismatch vs reference (max abs err "
        f"{float(jnp.max(jnp.abs(out - ref)))})")

    print("KERNEL_OK")
</pallas_src>

<mosaic_0001>
module attributes {stable_mosaic.version = 11 : i64} {
  func.func @ppo_critic_kernel(%arg0: i32, %arg1: memref<8x8xbf16, #tpu.memory_space<vmem>>, %arg2: memref<8x128xbf16, #tpu.memory_space<vmem>>, %arg3: memref<1x128xf32, #tpu.memory_space<vmem>>, %arg4: memref<128x128xbf16, #tpu.memory_space<vmem>>, %arg5: memref<1x128xf32, #tpu.memory_space<vmem>>, %arg6: memref<128x128xbf16, #tpu.memory_space<vmem>>, %arg7: memref<1x128xf32, #tpu.memory_space<vmem>>, %arg8: memref<1x128xf32, #tpu.memory_space<vmem>>, %arg9: memref<1x1xf32, #tpu.memory_space<vmem>>, %arg10: memref<8x1xf32, #tpu.memory_space<vmem>>) attributes {dimension_semantics = [#tpu.dimension_semantics<parallel>], iteration_bounds = array<i64: 1>, scalar_prefetch = 0 : i64, scratch_operands = 0 : i64, tpu.core_type = #tpu.core_type<tc>, window_params = [{transform_indices = @transform_0, window_bounds = array<i64: 8, 8>}, {pipeline_mode = #tpu.pipeline_mode<synchronous>, transform_indices = @transform_1, window_bounds = array<i64: 8, 128>}, {pipeline_mode = #tpu.pipeline_mode<synchronous>, transform_indices = @transform_2, window_bounds = array<i64: 1, 128>}, {pipeline_mode = #tpu.pipeline_mode<synchronous>, transform_indices = @transform_3, window_bounds = array<i64: 128, 128>}, {pipeline_mode = #tpu.pipeline_mode<synchronous>, transform_indices = @transform_4, window_bounds = array<i64: 1, 128>}, {pipeline_mode = #tpu.pipeline_mode<synchronous>, transform_indices = @transform_5, window_bounds = array<i64: 128, 128>}, {pipeline_mode = #tpu.pipeline_mode<synchronous>, transform_indices = @transform_6, window_bounds = array<i64: 1, 128>}, {pipeline_mode = #tpu.pipeline_mode<synchronous>, transform_indices = @transform_7, window_bounds = array<i64: 1, 128>}, {pipeline_mode = #tpu.pipeline_mode<synchronous>, transform_indices = @transform_8, window_bounds = array<i64: 1, 1>}, {transform_indices = @transform_9, window_bounds = array<i64: 8, 1>}]} {
    %c0 = arith.constant 0 : index
    %c0_0 = arith.constant 0 : index
    %0 = vector.load %arg1[%c0, %c0_0] : memref<8x8xbf16, #tpu.memory_space<vmem>>, vector<8x8xbf16>
    %c0_1 = arith.constant 0 : index
    %c0_2 = arith.constant 0 : index
    %1 = vector.load %arg2[%c0_1, %c0_2] : memref<8x128xbf16, #tpu.memory_space<vmem>>, vector<8x128xbf16>
    %cst = arith.constant dense<0.000000e+00> : vector<8x128xf32>
    %2 = tpu.matmul %0, %1, %cst {dimension_numbers = #tpu.dot_dimension_numbers<[1], [0], [0], [1], [0, 0, 1, 1], [], []>} : vector<8x8xbf16>, vector<8x128xbf16>, vector<8x128xf32> -> vector<8x128xf32>
    %c0_3 = arith.constant 0 : index
    %c0_4 = arith.constant 0 : index
    %3 = vector.load %arg3[%c0_3, %c0_4] : memref<1x128xf32, #tpu.memory_space<vmem>>, vector<1x128xf32>
    %4 = vector.broadcast %3 : vector<1x128xf32> to vector<8x128xf32>
    %5 = arith.addf %2, %4 : vector<8x128xf32>
    %cst_5 = arith.constant 0.000000e+00 : f32
    %6 = vector.broadcast %cst_5 : f32 to vector<8x128xf32>
    %7 = arith.maximumf %5, %6 : vector<8x128xf32>
    %8 = arith.truncf %7 : vector<8x128xf32> to vector<8x128xbf16>
    %c0_6 = arith.constant 0 : index
    %c0_7 = arith.constant 0 : index
    %9 = vector.load %arg4[%c0_6, %c0_7] : memref<128x128xbf16, #tpu.memory_space<vmem>>, vector<128x128xbf16>
    %cst_8 = arith.constant dense<0.000000e+00> : vector<8x128xf32>
    %10 = tpu.matmul %8, %9, %cst_8 {dimension_numbers = #tpu.dot_dimension_numbers<[1], [0], [0], [1], [0, 0, 1, 1], [], []>} : vector<8x128xbf16>, vector<128x128xbf16>, vector<8x128xf32> -> vector<8x128xf32>
    %c0_9 = arith.constant 0 : index
    %c0_10 = arith.constant 0 : index
    %11 = vector.load %arg5[%c0_9, %c0_10] : memref<1x128xf32, #tpu.memory_space<vmem>>, vector<1x128xf32>
    %12 = vector.broadcast %11 : vector<1x128xf32> to vector<8x128xf32>
    %13 = arith.addf %10, %12 : vector<8x128xf32>
    %cst_11 = arith.constant 0.000000e+00 : f32
    %14 = vector.broadcast %cst_11 : f32 to vector<8x128xf32>
    %15 = arith.maximumf %13, %14 : vector<8x128xf32>
    %16 = arith.truncf %15 : vector<8x128xf32> to vector<8x128xbf16>
    %c0_12 = arith.constant 0 : index
    %c0_13 = arith.constant 0 : index
    %17 = vector.load %arg6[%c0_12, %c0_13] : memref<128x128xbf16, #tpu.memory_space<vmem>>, vector<128x128xbf16>
    %cst_14 = arith.constant dense<0.000000e+00> : vector<8x128xf32>
    %18 = tpu.matmul %16, %17, %cst_14 {dimension_numbers = #tpu.dot_dimension_numbers<[1], [0], [0], [1], [0, 0, 1, 1], [], []>} : vector<8x128xbf16>, vector<128x128xbf16>, vector<8x128xf32> -> vector<8x128xf32>
    %c0_15 = arith.constant 0 : index
    %c0_16 = arith.constant 0 : index
    %19 = vector.load %arg7[%c0_15, %c0_16] : memref<1x128xf32, #tpu.memory_space<vmem>>, vector<1x128xf32>
    %20 = vector.broadcast %19 : vector<1x128xf32> to vector<8x128xf32>
    %21 = arith.addf %18, %20 : vector<8x128xf32>
    %cst_17 = arith.constant 0.000000e+00 : f32
    %22 = vector.broadcast %cst_17 : f32 to vector<8x128xf32>
    %23 = arith.maximumf %21, %22 : vector<8x128xf32>
    %c0_18 = arith.constant 0 : index
    %c0_19 = arith.constant 0 : index
    %24 = vector.load %arg8[%c0_18, %c0_19] : memref<1x128xf32, #tpu.memory_space<vmem>>, vector<1x128xf32>
    %25 = vector.broadcast %24 : vector<1x128xf32> to vector<8x128xf32>
    %26 = arith.mulf %23, %25 : vector<8x128xf32>
    %cst_20 = arith.constant dense<0.000000e+00> : vector<8xf32>
    %27 = vector.multi_reduction <add>, %26, %cst_20 [1] : vector<8x128xf32> to vector<8xf32>
    %28 = vector.shape_cast %27 : vector<8xf32> to vector<8x1xf32>
    %c0_21 = arith.constant 0 : index
    %c0_22 = arith.constant 0 : index
    %29 = vector.load %arg9[%c0_21, %c0_22] : memref<1x1xf32, #tpu.memory_space<vmem>>, vector<1x1xf32>
    %30 = vector.broadcast %29 : vector<1x1xf32> to vector<8x1xf32>
    %31 = arith.addf %28, %30 : vector<8x1xf32>
    %c0_23 = arith.constant 0 : index
    %c0_24 = arith.constant 0 : index
    %32 = vector.load %arg10[%c0_23, %c0_24] : memref<8x1xf32, #tpu.memory_space<vmem>>, vector<8x1xf32>
    tpu.vector_store %arg10[%c0_23, %c0_24], %31 {strides = array<i32>} : memref<8x1xf32, #tpu.memory_space<vmem>>, vector<8x1xf32>,
    return
  }
  func.func @transform_0(%arg0: i32) -> (i32, i32) {
    %c0_i32 = arith.constant 0 : i32
    %c0_i32_0 = arith.constant 0 : i32
    return %arg0, %c0_i32 : i32, i32
  }
  func.func @transform_1(%arg0: i32) -> (i32, i32) {
    %c0_i32 = arith.constant 0 : i32
    %c0_i32_0 = arith.constant 0 : i32
    %c0_i32_1 = arith.constant 0 : i32
    return %c0_i32, %c0_i32_0 : i32, i32
  }
  func.func @transform_2(%arg0: i32) -> (i32, i32) {
    %c0_i32 = arith.constant 0 : i32
    %c0_i32_0 = arith.constant 0 : i32
    %c0_i32_1 = arith.constant 0 : i32
    return %c0_i32, %c0_i32_0 : i32, i32
  }
  func.func @transform_3(%arg0: i32) -> (i32, i32) {
    %c0_i32 = arith.constant 0 : i32
    %c0_i32_0 = arith.constant 0 : i32
    %c0_i32_1 = arith.constant 0 : i32
    return %c0_i32, %c0_i32_0 : i32, i32
  }
  func.func @transform_4(%arg0: i32) -> (i32, i32) {
    %c0_i32 = arith.constant 0 : i32
    %c0_i32_0 = arith.constant 0 : i32
    %c0_i32_1 = arith.constant 0 : i32
    return %c0_i32, %c0_i32_0 : i32, i32
  }
  func.func @transform_5(%arg0: i32) -> (i32, i32) {
    %c0_i32 = arith.constant 0 : i32
    %c0_i32_0 = arith.constant 0 : i32
    %c0_i32_1 = arith.constant 0 : i32
    return %c0_i32, %c0_i32_0 : i32, i32
  }
  func.func @transform_6(%arg0: i32) -> (i32, i32) {
    %c0_i32 = arith.constant 0 : i32
    %c0_i32_0 = arith.constant 0 : i32
    %c0_i32_1 = arith.constant 0 : i32
    return %c0_i32, %c0_i32_0 : i32, i32
  }
  func.func @transform_7(%arg0: i32) -> (i32, i32) {
    %c0_i32 = arith.constant 0 : i32
    %c0_i32_0 = arith.constant 0 : i32
    %c0_i32_1 = arith.constant 0 : i32
    return %c0_i32, %c0_i32_0 : i32, i32
  }
  func.func @transform_8(%arg0: i32) -> (i32, i32) {
    %c0_i32 = arith.constant 0 : i32
    %c0_i32_0 = arith.constant 0 : i32
    %c0_i32_1 = arith.constant 0 : i32
    return %c0_i32, %c0_i32_0 : i32, i32
  }
  func.func @transform_9(%arg0: i32) -> (i32, i32) {
    %c0_i32 = arith.constant 0 : i32
    %c0_i32_0 = arith.constant 0 : i32
    return %arg0, %c0_i32 : i32, i32
  }
}

</mosaic_0001>

<llo_original>
// kernel: tpu_custom_call.1
$region0: #{tpu_custom_call.1}
  #allocation0 [shape = 'u32[]', space=smem, size = 0x4, offset = 0x4, fixed_abs, tag = 'smem constant byte address 0x4 - core index']
  #allocation1 [shape = 'u32[144,128]{1,0:T(1,128)}', space=vmem, size = 0x12000, scoped, tag = 'internal scratch']
  #allocation2 [shape = 'f32[1,1]{1,0:T(1,128)S(1)}', space=vmem, size = 0x200, scoped, tag = 'scoped memory for tpu_custom_call.1']
  %s0 = inlined_call_operand.hbm [shape: bf16[8,8], index: 0, kind: input, shape index: {}]
  %s1 = inlined_call_operand.vmem [shape: bf16[8,128], index: 1, kind: input, shape index: {}]
  %s2 = inlined_call_operand.vmem [shape: f32[1,128], index: 2, kind: input, shape index: {}]
  %s3 = inlined_call_operand.hbm [shape: bf16[128,128], index: 3, kind: input, shape index: {}]
  %s4 = inlined_call_operand.vmem [shape: f32[1,128], index: 4, kind: input, shape index: {}]
  %s5 = inlined_call_operand.hbm [shape: bf16[128,128], index: 5, kind: input, shape index: {}]
  %s6 = inlined_call_operand.vmem [shape: f32[1,128], index: 6, kind: input, shape index: {}]
  %s7 = inlined_call_operand.vmem [shape: f32[1,128], index: 7, kind: input, shape index: {}]
  %s8 = inlined_call_operand.<no memory space> [shape: f32[1,1], index: 8, kind: input, shape index: {}]
  %s9 = inlined_call_operand.vmem [shape: f32[8,1], index: 9, kind: output, shape index: {}]
  %s10 = sld [smem:[#allocation0]]
  $region58: #{tpu_custom_call.1} parent=0
    _
  %s12 = ssub.s32 1, %s10
  %s13 = scalar_select 0, %s12, %s10
  %v14 = vstv %s8
  %15 = vst [vmem:[#allocation2] sm:$0x1] %v14
  $region1: #{tpu_custom_call.1} parent=0
    #allocation3 [shape = 'u8[2048]{0}', space=vmem, size = 0x800, scoped, tag = 'input window, operand 0, single buffered']
    #allocation4 [shape = 's32[1]{0}', space=sflag, size = 0x4, scoped, tag = 'scoped memory for tpu_custom_call.1']
    #allocation5 [shape = 'u8[32768]{0}', space=vmem, size = 0x8000, scoped, tag = 'input window, operand 3, single buffered']
    #allocation6 [shape = 's32[1]{0}', space=sflag, size = 0x4, scoped, tag = 'scoped memory for tpu_custom_call.1']
    #allocation7 [shape = 'u8[32768]{0}', space=vmem, size = 0x8000, scoped, tag = 'input window, operand 5, single buffered']
    %16 = vsyncpa [#allocation4], 0
    %17 = vsyncpa [#allocation6], 0
    // Predicated region
    $region2: #{tpu_custom_call.1} parent=1 // pred_check
      _
    $region3: #{tpu_custom_call.1} parent=1 // pred_check_branch
      %19 = sbr.rel (0) target = $region5
    $region4: #{tpu_custom_call.1} parent=1 // pred_region
      %s21 = ssub.s32 64, 64
      %22 = vsyncadd [#allocation4], %s21
      %s24 = sshll.u32 [#allocation3], 4
      %s25 = int_to_ptr.vmem [resolvable:$true] %s24
      %27 = dma.hbm_to_vmem [thread:$0]  %s0, 64, %s25, [#allocation4]
    $region5: #{tpu_custom_call.1} parent=1 // pred_fallthru
      _
    // Predicated region
    $region6: #{tpu_custom_call.1} parent=1 // pred_check
      _
    $region7: #{tpu_custom_call.1} parent=1 // pred_check_branch
      %29 = sbr.rel (0) target = $region9
    $region8: #{tpu_custom_call.1} parent=1 // pred_region
      _
    $region9: #{tpu_custom_call.1} parent=1 // pred_fallthru
      _
    // Predicated region
    $region10: #{tpu_custom_call.1} parent=1 // pred_check
      _
    $region11: #{tpu_custom_call.1} parent=1 // pred_check_branch
      %31 = sbr.rel (0) target = $region13
    $region12: #{tpu_custom_call.1} parent=1 // pred_region
      _
    $region13: #{tpu_custom_call.1} parent=1 // pred_fallthru
      _
    // Predicated region
    $region14: #{tpu_custom_call.1} parent=1 // pred_check
      _
    $region15: #{tpu_custom_call.1} parent=1 // pred_check_branch
      %33 = sbr.rel (0) target = $region17
    $region16: #{tpu_custom_call.1} parent=1 // pred_region
      %s35 = ssub.s32 1024, 1024
      %36 = vsyncadd [#allocation6], %s35
      %s37 = sshll.u32 [#allocation5], 4
      %s38 = int_to_ptr.vmem [resolvable:$true] %s37
      %43 = dma.hbm_to_vmem [thread:$0]  %s3, 1024, %s38, [#allocation6], 64, 64, 4
    $region17: #{tpu_custom_call.1} parent=1 // pred_fallthru
      _
    // Predicated region
    $region18: #{tpu_custom_call.1} parent=1 // pred_check
      _
    $region19: #{tpu_custom_call.1} parent=1 // pred_check_branch
      %45 = sbr.rel (0) target = $region21
    $region20: #{tpu_custom_call.1} parent=1 // pred_region
      _
    $region21: #{tpu_custom_call.1} parent=1 // pred_fallthru
      _
    // Predicated region
    $region22: #{tpu_custom_call.1} parent=1 // pred_check
      _
    $region23: #{tpu_custom_call.1} parent=1 // pred_check_branch
      %47 = sbr.rel (0) target = $region25
    $region24: #{tpu_custom_call.1} parent=1 // pred_region
      %s49 = ssub.s32 1024, 1024
      %50 = vsyncadd [#allocation6], %s49
      %s51 = sshll.u32 [#allocation7], 4
      %s52 = int_to_ptr.vmem [resolvable:$true] %s51
      %57 = dma.hbm_to_vmem [thread:$0]  %s5, 1024, %s52, [#allocation6], 64, 64, 4
    $region25: #{tpu_custom_call.1} parent=1 // pred_fallthru
      _
    // Predicated region
    $region26: #{tpu_custom_call.1} parent=1 // pred_check
      _
    $region27: #{tpu_custom_call.1} parent=1 // pred_check_branch
      %59 = sbr.rel (0) target = $region29
    $region28: #{tpu_custom_call.1} parent=1 // pred_region
      _
    $region29: #{tpu_custom_call.1} parent=1 // pred_fallthru
      _
    // Predicated region
    $region30: #{tpu_custom_call.1} parent=1 // pred_check
      _
    $region31: #{tpu_custom_call.1} parent=1 // pred_check_branch
      %61 = sbr.rel (0) target = $region33
    $region32: #{tpu_custom_call.1} parent=1 // pred_region
      _
    $region33: #{tpu_custom_call.1} parent=1 // pred_fallthru
      _
    // Predicated region
    $region34: #{tpu_custom_call.1} parent=1 // pred_check
      _
    $region35: #{tpu_custom_call.1} parent=1 // pred_check_branch
      %63 = sbr.rel (0) target = $region37
    $region36: #{tpu_custom_call.1} parent=1 // pred_region
      _
    $region37: #{tpu_custom_call.1} parent=1 // pred_fallthru
      _
    // Predicated region
    $region38: #{tpu_custom_call.1} parent=1 // pred_check
      _
    $region39: #{tpu_custom_call.1} parent=1 // pred_check_branch
      %65 = sbr.rel (0) target = $region41
    $region40: #{tpu_custom_call.1} parent=1 // pred_region
      %66 = dma.done [#allocation4], 64
    $region41: #{tpu_custom_call.1} parent=1 // pred_fallthru
      _
    // Predicated region
    $region42: #{tpu_custom_call.1} parent=1 // pred_check
      _
    $region43: #{tpu_custom_call.1} parent=1 // pred_check_branch
      %68 = sbr.rel (0) target = $region45
    $region44: #{tpu_custom_call.1} parent=1 // pred_region
      %69 = dma.done [#allocation6], 1024
    $region45: #{tpu_custom_call.1} parent=1 // pred_fallthru
      _
    // Predicated region
    $region46: #{tpu_custom_call.1} parent=1 // pred_check
      _
    $region47: #{tpu_custom_call.1} parent=1 // pred_check_branch
      %71 = sbr.rel (0) target = $region49
    $region48: #{tpu_custom_call.1} parent=1 // pred_region
      %72 = dma.done [#allocation6], 1024
    $region49: #{tpu_custom_call.1} parent=1 // pred_fallthru
      _
    %v74 = vld [vmem:[#allocation3] sm:$0xf]
    %v75 = vld [vmem:[%s1] sm:$0xf]
    %v76 = vld [vmem:[%s2] sm:$0x1]
    %v78 = vlaneseq
    %v79 = vshrl.u32 %v78, 7
    %v80 = vsub.s32 0, %v79
    %v81 = vrot.slane %v76, %v80
    %vm83 = vcmask 64512
    %v85 = vsel %vm83, %v74, 0
    %vm87 = vcmask 1043456
    %v89 = vsel %vm87, %v75, 0
    %91 = vmatprep.subr.bf16.mxu0 0
    %92 = vmatpush1.bf16.msra.mxu0 %v89
    %93 = vmatprep.subr.bf16.mxu0 0
    %94 = vmatpush1.bf16.msra.mxu0 0
    %95 = vmatprep.subr.bf16.mxu0 0
    %96 = vmatpush1.bf16.msra.mxu0 0
    %97 = vmatprep.subr.bf16.mxu0 0
    %98 = vmatpush1.bf16.msra.mxu0 0
    %99 = vmatprep.subr.bf16.mxu0 0
    %100 = vmatpush1.bf16.msra.mxu0 0
    %101 = vmatprep.subr.bf16.mxu0 0
    %102 = vmatpush1.bf16.msra.mxu0 0
    %103 = vmatprep.subr.bf16.mxu0 0
    %104 = vmatpush1.bf16.msra.mxu0 0
    %105 = vmatprep.subr.bf16.mxu0 0
    %106 = vmatpush1.bf16.msra.mxu0 0
    %107 = vmatprep.subr.bf16.mxu0 0
    %108 = vmatpush1.bf16.msra.mxu0 0
    %109 = vmatprep.subr.bf16.mxu0 0
    %110 = vmatpush1.bf16.msra.mxu0 0
    %111 = vmatprep.subr.bf16.mxu0 0
    %112 = vmatpush1.bf16.msra.mxu0 0
    %113 = vmatprep.subr.bf16.mxu0 0
    %114 = vmatpush1.bf16.msra.mxu0 0
    %115 = vmatprep.subr.bf16.mxu0 0
    %116 = vmatpush1.bf16.msra.mxu0 0
    %117 = vmatprep.subr.bf16.mxu0 0
    %118 = vmatpush1.bf16.msra.mxu0 0
    %119 = vmatprep.subr.bf16.mxu0 0
    %120 = vmatpush1.bf16.msra.mxu0 0
    %121 = vmatprep.subr.bf16.mxu0 0
    %122 = vmatpush1.bf16.msra.mxu0 0
    %123 = vmatprep.mubr.bf16.mxu0 0
    %124 = vmatmul.mubr.bf16.gmra.mrb[0].mxu0 %v85
    %v125 = vpop.f32.mrb[0].mxu0
    %v126 = vadd.f32 %v81, %v125
    %v127 = vpop.f32.mrb[0].mxu0
    %v128 = vpop.f32.mrb[0].mxu0
    %v129 = vpop.f32.mrb[0].mxu0
    %130 = vdwg.mxu0
    %v131 = vmax.f32 %v126, 0.0
    %v132 = vpack.c.bf16 %v131, %v131
    %v133 = vld [vmem:[#allocation5] sm:$0xf]
    %v134 = vld [vmem:[#allocation5 + $0x4] sm:$0xf]
    %v135 = vld [vmem:[#allocation5 + $0x8] sm:$0xf]
    %v136 = vld [vmem:[#allocation5 + $0xc] sm:$0xf]
    %v137 = vld [vmem:[#allocation5 + $0x10] sm:$0xf]
    %v138 = vld [vmem:[#allocation5 + $0x14] sm:$0xf]
    %v139 = vld [vmem:[#allocation5 + $0x18] sm:$0xf]
    %v140 = vld [vmem:[#allocation5 + $0x1c] sm:$0xf]
    %v141 = vld [vmem:[#allocation5 + $0x20] sm:$0xf]
    %v142 = vld [vmem:[#allocation5 + $0x24] sm:$0xf]
    %v143 = vld [vmem:[#allocation5 + $0x28] sm:$0xf]
    %v144 = vld [vmem:[#allocation5 + $0x2c] sm:$0xf]
    %v145 = vld [vmem:[#allocation5 + $0x30] sm:$0xf]
    %v146 = vld [vmem:[#allocation5 + $0x34] sm:$0xf]
    %v147 = vld [vmem:[#allocation5 + $0x38] sm:$0xf]
    %v148 = vld [vmem:[#allocation5 + $0x3c] sm:$0xf]
    %v149 = vld [vmem:[%s4] sm:$0x1]
    %v151 = vlaneseq
    %v152 = vshrl.u32 %v151, 7
    %v153 = vsub.s32 0, %v152
    %v154 = vrot.slane %v149, %v153
    %v172 = vunpack.c.l.b16 %v133
    %v173 = vunpack.c.l.b16 %v134
    %v174 = vunpack.c.l.b16 %v135
    %v175 = vunpack.c.l.b16 %v136
    %v176 = vunpack.c.l.b16 %v137
    %v177 = vunpack.c.l.b16 %v138
    %v178 = vunpack.c.l.b16 %v139
    %v179 = vunpack.c.l.b16 %v140
    %v180 = vunpack.c.l.b16 %v141
    %v181 = vunpack.c.l.b16 %v142
    %v182 = vunpack.c.l.b16 %v143
    %v183 = vunpack.c.l.b16 %v144
    %v184 = vunpack.c.l.b16 %v145
    %v185 = vunpack.c.l.b16 %v146
    %v186 = vunpack.c.l.b16 %v147
    %v187 = vunpack.c.l.b16 %v148
    %v188 = vpack.c.b16 %v173, %v172
    %v189 = vpack.c.b16 %v175, %v174
    %v190 = vpack.c.b16 %v177, %v176
    %v191 = vpack.c.b16 %v179, %v178
    %v192 = vpack.c.b16 %v181, %v180
    %v193 = vpack.c.b16 %v183, %v182
    %v194 = vpack.c.b16 %v185, %v184
    %v195 = vpack.c.b16 %v187, %v186
    %204 = vmatprep.subr.bf16.mxu0 0
    %205 = vmatpush1.bf16.msra.mxu0 %v188
    %206 = vmatprep.subr.bf16.mxu0 0
    %207 = vmatpush1.bf16.msra.mxu0 %v189
    %208 = vmatprep.subr.bf16.mxu0 0
    %209 = vmatpush1.bf16.msra.mxu0 %v190
    %210 = vmatprep.subr.bf16.mxu0 0
    %211 = vmatpush1.bf16.msra.mxu0 %v191
    %212 = vmatprep.subr.bf16.mxu0 0
    %213 = vmatpush1.bf16.msra.mxu0 %v192
    %214 = vmatprep.subr.bf16.mxu0 0
    %215 = vmatpush1.bf16.msra.mxu0 %v193
    %216 = vmatprep.subr.bf16.mxu0 0
    %217 = vmatpush1.bf16.msra.mxu0 %v194
    %218 = vmatprep.subr.bf16.mxu0 0
    %219 = vmatpush1.bf16.msra.mxu0 %v195
    %220 = vmatprep.subr.bf16.mxu0 0
    %221 = vmatpush1.bf16.msra.mxu0 0
    %222 = vmatprep.subr.bf16.mxu0 0
    %223 = vmatpush1.bf16.msra.mxu0 0
    %224 = vmatprep.subr.bf16.mxu0 0
    %225 = vmatpush1.bf16.msra.mxu0 0
    %226 = vmatprep.subr.bf16.mxu0 0
    %227 = vmatpush1.bf16.msra.mxu0 0
    %228 = vmatprep.subr.bf16.mxu0 0
    %229 = vmatpush1.bf16.msra.mxu0 0
    %230 = vmatprep.subr.bf16.mxu0 0
    %231 = vmatpush1.bf16.msra.mxu0 0
    %232 = vmatprep.subr.bf16.mxu0 0
    %233 = vmatpush1.bf16.msra.mxu0 0
    %234 = vmatprep.subr.bf16.mxu0 0
    %235 = vmatpush1.bf16.msra.mxu0 0
    %236 = vmatprep.mubr.bf16.mxu0 0
    %237 = vmatmul.mubr.bf16.gmra.mrb[0].mxu0 %v132
    %v238 = vpop.f32.mrb[0].mxu0
    %v239 = vadd.f32 %v154, %v238
    %v240 = vpop.f32.mrb[0].mxu0
    %v241 = vpop.f32.mrb[0].mxu0
    %v242 = vpop.f32.mrb[0].mxu0
    %243 = vdwg.mxu0
    %v244 = vmax.f32 %v239, 0.0
    %v245 = vpack.c.bf16 %v244, %v244
    %v246 = vld [vmem:[#allocation7] sm:$0xf]
    %v247 = vld [vmem:[#allocation7 + $0x4] sm:$0xf]
    %v248 = vld [vmem:[#allocation7 + $0x8] sm:$0xf]
    %v249 = vld [vmem:[#allocation7 + $0xc] sm:$0xf]
    %v250 = vld [vmem:[#allocation7 + $0x10] sm:$0xf]
    %v251 = vld [vmem:[#allocation7 + $0x14] sm:$0xf]
    %v252 = vld [vmem:[#allocation7 + $0x18] sm:$0xf]
    %v253 = vld [vmem:[#allocation7 + $0x1c] sm:$0xf]
    %v254 = vld [vmem:[#allocation7 + $0x20] sm:$0xf]
    %v255 = vld [vmem:[#allocation7 + $0x24] sm:$0xf]
    %v256 = vld [vmem:[#allocation7 + $0x28] sm:$0xf]
    %v257 = vld [vmem:[#allocation7 + $0x2c] sm:$0xf]
    %v258 = vld [vmem:[#allocation7 + $0x30] sm:$0xf]
    %v259 = vld [vmem:[#allocation7 + $0x34] sm:$0xf]
    %v260 = vld [vmem:[#allocation7 + $0x38] sm:$0xf]
    %v261 = vld [vmem:[#allocation7 + $0x3c] sm:$0xf]
    %v262 = vld [vmem:[%s6] sm:$0x1]
    %v264 = vlaneseq
    %v265 = vshrl.u32 %v264, 7
    %v266 = vsub.s32 0, %v265
    %v267 = vrot.slane %v262, %v266
    %v285 = vunpack.c.l.b16 %v246
    %v286 = vunpack.c.l.b16 %v247
    %v287 = vunpack.c.l.b16 %v248
    %v288 = vunpack.c.l.b16 %v249
    %v289 = vunpack.c.l.b16 %v250
    %v290 = vunpack.c.l.b16 %v251
    %v291 = vunpack.c.l.b16 %v252
    %v292 = vunpack.c.l.b16 %v253
    %v293 = vunpack.c.l.b16 %v254
    %v294 = vunpack.c.l.b16 %v255
    %v295 = vunpack.c.l.b16 %v256
    %v296 = vunpack.c.l.b16 %v257
    %v297 = vunpack.c.l.b16 %v258
    %v298 = vunpack.c.l.b16 %v259
    %v299 = vunpack.c.l.b16 %v260
    %v300 = vunpack.c.l.b16 %v261
    %v301 = vpack.c.b16 %v286, %v285
    %v302 = vpack.c.b16 %v288, %v287
    %v303 = vpack.c.b16 %v290, %v289
    %v304 = vpack.c.b16 %v292, %v291
    %v305 = vpack.c.b16 %v294, %v293
    %v306 = vpack.c.b16 %v296, %v295
    %v307 = vpack.c.b16 %v298, %v297
    %v308 = vpack.c.b16 %v300, %v299
    %317 = vmatprep.subr.bf16.mxu0 0
    %318 = vmatpush1.bf16.msra.mxu0 %v301
    %319 = vmatprep.subr.bf16.mxu0 0
    %320 = vmatpush1.bf16.msra.mxu0 %v302
    %321 = vmatprep.subr.bf16.mxu0 0
    %322 = vmatpush1.bf16.msra.mxu0 %v303
    %323 = vmatprep.subr.bf16.mxu0 0
    %324 = vmatpush1.bf16.msra.mxu0 %v304
    %325 = vmatprep.subr.bf16.mxu0 0
    %326 = vmatpush1.bf16.msra.mxu0 %v305
    %327 = vmatprep.subr.bf16.mxu0 0
    %328 = vmatpush1.bf16.msra.mxu0 %v306
    %329 = vmatprep.subr.bf16.mxu0 0
    %330 = vmatpush1.bf16.msra.mxu0 %v307
    %331 = vmatprep.subr.bf16.mxu0 0
    %332 = vmatpush1.bf16.msra.mxu0 %v308
    %333 = vmatprep.subr.bf16.mxu0 0
    %334 = vmatpush1.bf16.msra.mxu0 0
    %335 = vmatprep.subr.bf16.mxu0 0
    %336 = vmatpush1.bf16.msra.mxu0 0
    %337 = vmatprep.subr.bf16.mxu0 0
    %338 = vmatpush1.bf16.msra.mxu0 0
    %339 = vmatprep.subr.bf16.mxu0 0
    %340 = vmatpush1.bf16.msra.mxu0 0
    %341 = vmatprep.subr.bf16.mxu0 0
    %342 = vmatpush1.bf16.msra.mxu0 0
    %343 = vmatprep.subr.bf16.mxu0 0
    %344 = vmatpush1.bf16.msra.mxu0 0
    %345 = vmatprep.subr.bf16.mxu0 0
    %346 = vmatpush1.bf16.msra.mxu0 0
    %347 = vmatprep.subr.bf16.mxu0 0
    %348 = vmatpush1.bf16.msra.mxu0 0
    %349 = vmatprep.mubr.bf16.mxu0 0
    %350 = vmatmul.mubr.bf16.gmra.mrb[0].mxu0 %v245
    %v351 = vpop.f32.mrb[0].mxu0
    %v352 = vadd.f32 %v267, %v351
    %v353 = vpop.f32.mrb[0].mxu0
    %v354 = vpop.f32.mrb[0].mxu0
    %v355 = vpop.f32.mrb[0].mxu0
    %356 = vdwg.mxu0
    %v357 = vmax.f32 %v352, 0.0
    %v358 = vld [vmem:[%s7] sm:$0x1]
    %v360 = vlaneseq
    %v361 = vshrl.u32 %v360, 7
    %v362 = vsub.s32 0, %v361
    %v363 = vrot.slane %v358, %v362
    %v365 = vmul.f32 %v357, %v363
    %366 = vadd.xlane.f32.xlu0 %v365
    %v367 = vpop.xlane.xlu0 %366
    %v368 = vld [vmem:[#allocation2] sm:$0x1]
    %v370 = vlaneseq
    %v371 = vshrl.u32 %v370, 7
    %v372 = vsub.s32 0, %v371
    %v373 = vrot.slane %v368, %v372
    %v375 = vadd.f32 %v367, %v373
    %vm376 = vcmask 7168
    %377 = vst.msk [vmem:[%s9] sm:$0xff] %vm376, %v375
    // Predicated region
    $region50: #{tpu_custom_call.1} parent=1 // pred_check
      _
    $region51: #{tpu_custom_call.1} parent=1 // pred_check_branch
      %379 = sbr.rel (0) target = $region53
    $region52: #{tpu_custom_call.1} parent=1 // pred_region
      _
    $region53: #{tpu_custom_call.1} parent=1 // pred_fallthru
      _
    // Predicated region
    $region54: #{tpu_custom_call.1} parent=1 // pred_check
      _
    $region55: #{tpu_custom_call.1} parent=1 // pred_check_branch
      %381 = sbr.rel (0) target = $region57
    $region56: #{tpu_custom_call.1} parent=1 // pred_region
      _
    $region57: #{tpu_custom_call.1} parent=1 // pred_fallthru
      _
    %382 = vsyncpa [#allocation4], 1
    %383 = vsyncpa [#allocation6], 1

</llo_original>
